<compile_context>
chip_gen: v7x
topology: tpu7x:2x2x1
jax: 0.10.0
libtpu: 0.0.40
codegen_flags: <defaults>
</compile_context>

<pallas_src>
import math

import jax
import jax.numpy as jnp
from jax.experimental import pallas as pl
from jax.experimental.pallas import tpu as pltpu


def _round_up(x, m):
    return ((x + m - 1) // m) * m


def _choose_tile(HW, C, B, *, vmem_budget=32 << 20, max_tile=8192, min_steps=4):
    """Largest lane-aligned (multiple-of-128) spatial tile such that two
    double-buffered input blocks (2 * C * t * 4B) fit `vmem_budget`, capped so
    the (B, HW/t) grid keeps >= min_steps steps (v7x megacore balance)."""
    t_budget = max(128, (vmem_budget // (2 * C * 4) // 128) * 128)
    t = max(128, min(max_tile, t_budget, _round_up(HW, 128)))
    # keep enough grid steps so both v7x TensorCores get work (v5e/v6e: 1 TC)
    while t > 128 and B * ((HW + t - 1) // t) < min_steps:
        t = max(128, ((t // 2) // 128) * 128)
    if t >= HW:
        return HW  # single block; block == full array dim is always layout-legal
    return t


# ----------------------------------------------------------------------------
# Fused kernel: conv1x1 -> GELU(exact erf) -> conv1x1 -> sigmoid
# ----------------------------------------------------------------------------
def _spatial_interaction_kernel(x_ref, w1_ref, b1_ref, w2_ref, b2_ref, o_ref):
    # x_ref : (1, C, T)   one batch element, all channels, T spatial positions
    # w1_ref: (C4, C)     conv1 weight   b1_ref: (C4, 1)
    # w2_ref: (C4, 1)     conv2 weight (column)   b2_ref: (1, 1)
    # o_ref : (1, 1, T)   lane-dense output row
    x = x_ref[0]                                                       # (C, T)

    h = jnp.dot(w1_ref[...], x, preferred_element_type=jnp.float32)   # (C4, T) MXU
    h = h + b1_ref[...]
    # exact (erf) GELU to match torch.nn.GELU() default
    h = 0.5 * h * (1.0 + jax.lax.erf(h * (1.0 / math.sqrt(2.0))))

    # second 1x1 conv has a single output channel: VPU multiply + sublane
    # (axis 0) reduction on the XLU slot instead of an M=1 MXU matmul.
    o = jnp.sum(h * w2_ref[...], axis=0, keepdims=True) + b2_ref[...]  # (1, T)
    o_ref[0] = jax.nn.sigmoid(o)


def spatial_interaction(x_nchw, params, *, tile_hw=None):
    """x_nchw: (B, dim, H, W) float32 -> (B, 1, H, W) float32."""
    B, C, H, W = x_nchw.shape
    C4 = params["w1"].shape[0]
    HW = H * W

    if tile_hw is None:
        t = _choose_tile(HW, C, B)
    else:
        t = min(_round_up(tile_hw, 128), _round_up(HW, 128))  # enforce lane alignment
        if t >= HW:
            t = HW

    # No jnp.pad: ragged last spatial block is handled by Pallas (reads of the
    # padded region are undefined but position-wise, and OOB writes are masked).
    x = x_nchw.reshape(B, C, HW)

    w1 = params["w1"].reshape(C4, C)          # (C4, C, 1, 1) -> (C4, C)
    b1 = params["b1"].reshape(C4, 1)
    w2 = params["w2"].reshape(C4, 1)          # (1, C4, 1, 1) -> (C4, 1) column
    b2 = params["b2"].reshape(1, 1)

    grid = (B, pl.cdiv(HW, t))

    # Explicit VMEM cap: our tile budget keeps the working set well under this;
    # 48 MiB fits v7x's 64 MiB physical VMEM and overrides v5e's 16 MiB default.
    vmem_limit = 48 << 20

    out = pl.pallas_call(
        _spatial_interaction_kernel,
        out_shape=jax.ShapeDtypeStruct((B, 1, HW), jnp.float32),
        grid=grid,
        in_specs=[
            pl.BlockSpec((1, C, t), lambda b, j: (b, 0, j)),   # activations (tiled)
            pl.BlockSpec((C4, C), lambda b, j: (0, 0)),        # weights resident
            pl.BlockSpec((C4, 1), lambda b, j: (0, 0)),
            pl.BlockSpec((C4, 1), lambda b, j: (0, 0)),
            pl.BlockSpec((1, 1), lambda b, j: (0, 0)),
        ],
        out_specs=pl.BlockSpec((1, 1, t), lambda b, j: (b, 0, j)),
        compiler_params=pltpu.CompilerParams(
            dimension_semantics=("parallel", "parallel"),      # megacore-friendly
            vmem_limit_bytes=vmem_limit,
        ),
    )(x, w1, b1, w2, b2)

    return out.reshape(B, 1, H, W)


# ----------------------------------------------------------------------------
# Pure-JAX reference (for correctness check only)
# ----------------------------------------------------------------------------
def spatial_interaction_ref(x_nchw, params):
    B, C, H, W = x_nchw.shape
    C4 = params["w1"].shape[0]
    x = jnp.transpose(x_nchw, (0, 2, 3, 1)).reshape(-1, C)
    h = x @ params["w1"].reshape(C4, C).T + params["b1"]
    h = 0.5 * h * (1.0 + jax.lax.erf(h / jnp.sqrt(2.0)))
    o = h @ params["w2"].reshape(1, C4).T + params["b2"]
    o = jax.nn.sigmoid(o)
    return jnp.transpose(o.reshape(B, H, W, 1), (0, 3, 1, 2))


# ----------------------------------------------------------------------------
# Deterministic synthetic parameters (shapes from the module __init__)
# ----------------------------------------------------------------------------
def init_params(key, dim):
    c4 = dim // 4
    k1, k2, k3, k4 = jax.random.split(key, 4)
    return dict(
        w1=(jax.random.normal(k1, (c4, dim, 1, 1)) / math.sqrt(dim)).astype(jnp.float32),
        b1=(0.1 * jax.random.normal(k2, (c4,))).astype(jnp.float32),
        w2=(jax.random.normal(k3, (1, c4, 1, 1)) / math.sqrt(c4)).astype(jnp.float32),
        b2=(0.1 * jax.random.normal(k4, (1,))).astype(jnp.float32),
    )


if __name__ == "__main__":
    key = jax.random.PRNGKey(0)
    run = jax.jit(spatial_interaction)

    # (B, dim, H, W): main case + a ragged-HW case + a tiny-HW case.
    cases = [
        (2, 32, 32, 32),   # HW=1024, lane-aligned tiles
        (2, 32, 20, 20),   # HW=400, exercises ragged last block (no input pad)
        (2, 16, 8, 8),     # HW=64 < 128, single full-row block
    ]
    for (B, dim, H, W) in cases:
        kx, kp, key = jax.random.split(key, 3)
        x = jax.random.normal(kx, (B, dim, H, W), dtype=jnp.float32)
        params = init_params(kp, dim)

        out = run(x, params)
        jax.block_until_ready(out)

        ref = spatial_interaction_ref(x, params)
        assert out.shape == (B, 1, H, W) and out.dtype == jnp.float32
        err = float(jnp.max(jnp.abs(out - ref)))
        assert jnp.allclose(out, ref, atol=1e-5, rtol=1e-5), (B, dim, H, W, err)

    print("KERNEL_OK")
</pallas_src>

<mosaic_0001>
module attributes {stable_mosaic.version = 11 : i64} {
  func.func @_spatial_interaction_kernel(%arg0: i32, %arg1: i32, %arg2: memref<1x32x512xf32, #tpu.memory_space<vmem>>, %arg3: memref<8x32xf32, #tpu.memory_space<vmem>>, %arg4: memref<8x1xf32, #tpu.memory_space<vmem>>, %arg5: memref<8x1xf32, #tpu.memory_space<vmem>>, %arg6: memref<1x1xf32, #tpu.memory_space<vmem>>, %arg7: memref<1x1x512xf32, #tpu.memory_space<vmem>>) attributes {dimension_semantics = [#tpu.dimension_semantics<parallel>, #tpu.dimension_semantics<parallel>], iteration_bounds = array<i64: 2, 2>, scalar_prefetch = 0 : i64, scratch_operands = 0 : i64, tpu.core_type = #tpu.core_type<tc>, window_params = [{transform_indices = @transform_0, window_bounds = array<i64: 1, 32, 512>}, {pipeline_mode = #tpu.pipeline_mode<synchronous>, transform_indices = @transform_1, window_bounds = array<i64: 8, 32>}, {pipeline_mode = #tpu.pipeline_mode<synchronous>, transform_indices = @transform_2, window_bounds = array<i64: 8, 1>}, {pipeline_mode = #tpu.pipeline_mode<synchronous>, transform_indices = @transform_3, window_bounds = array<i64: 8, 1>}, {pipeline_mode = #tpu.pipeline_mode<synchronous>, transform_indices = @transform_4, window_bounds = array<i64: 1, 1>}, {transform_indices = @transform_5, window_bounds = array<i64: 1, 1, 512>}]} {
    %c0 = arith.constant 0 : index
    %c0_0 = arith.constant 0 : index
    %c0_1 = arith.constant 0 : index
    %0 = vector.load %arg2[%c0, %c0_0, %c0_1] : memref<1x32x512xf32, #tpu.memory_space<vmem>>, vector<1x32x512xf32>
    %1 = vector.shape_cast %0 : vector<1x32x512xf32> to vector<32x512xf32>
    %c0_2 = arith.constant 0 : index
    %c0_3 = arith.constant 0 : index
    %2 = vector.load %arg3[%c0_2, %c0_3] : memref<8x32xf32, #tpu.memory_space<vmem>>, vector<8x32xf32>
    %cst = arith.constant dense<0.000000e+00> : vector<8x512xf32>
    %3 = tpu.matmul %2, %1, %cst {dimension_numbers = #tpu.dot_dimension_numbers<[1], [0], [0], [1], [0, 0, 1, 1], [], []>} : vector<8x32xf32>, vector<32x512xf32>, vector<8x512xf32> -> vector<8x512xf32>
    %c0_4 = arith.constant 0 : index
    %c0_5 = arith.constant 0 : index
    %4 = vector.load %arg4[%c0_4, %c0_5] : memref<8x1xf32, #tpu.memory_space<vmem>>, vector<8x1xf32>
    %5 = vector.broadcast %4 : vector<8x1xf32> to vector<8x512xf32>
    %6 = arith.addf %3, %5 : vector<8x512xf32>
    %cst_6 = arith.constant 5.000000e-01 : f32
    %7 = vector.broadcast %cst_6 : f32 to vector<8x512xf32>
    %8 = arith.mulf %7, %6 : vector<8x512xf32>
    %cst_7 = arith.constant 0.707106769 : f32
    %9 = vector.broadcast %cst_7 : f32 to vector<8x512xf32>
    %10 = arith.mulf %6, %9 : vector<8x512xf32>
    %11 = math.erf %10 : vector<8x512xf32>
    %cst_8 = arith.constant 1.000000e+00 : f32
    %12 = vector.broadcast %cst_8 : f32 to vector<8x512xf32>
    %13 = arith.addf %12, %11 : vector<8x512xf32>
    %14 = arith.mulf %8, %13 : vector<8x512xf32>
    %c0_9 = arith.constant 0 : index
    %c0_10 = arith.constant 0 : index
    %15 = vector.load %arg5[%c0_9, %c0_10] : memref<8x1xf32, #tpu.memory_space<vmem>>, vector<8x1xf32>
    %16 = vector.broadcast %15 : vector<8x1xf32> to vector<8x512xf32>
    %17 = arith.mulf %14, %16 : vector<8x512xf32>
    %cst_11 = arith.constant dense<0.000000e+00> : vector<512xf32>
    %18 = vector.multi_reduction <add>, %17, %cst_11 [0] : vector<8x512xf32> to vector<512xf32>
    %19 = vector.shape_cast %18 : vector<512xf32> to vector<1x512xf32>
    %c0_12 = arith.constant 0 : index
    %c0_13 = arith.constant 0 : index
    %20 = vector.load %arg6[%c0_12, %c0_13] : memref<1x1xf32, #tpu.memory_space<vmem>>, vector<1x1xf32>
    %21 = vector.broadcast %20 : vector<1x1xf32> to vector<1x512xf32>
    %22 = arith.addf %19, %21 : vector<1x512xf32>
    %23 = arith.negf %22 : vector<1x512xf32>
    %24 = math.exp %23 : vector<1x512xf32>
    %cst_14 = arith.constant 1.000000e+00 : f32
    %25 = vector.broadcast %cst_14 : f32 to vector<1x512xf32>
    %26 = arith.addf %25, %24 : vector<1x512xf32>
    %27 = arith.divf %25, %26 : vector<1x512xf32>
    %c0_15 = arith.constant 0 : index
    %c0_16 = arith.constant 0 : index
    %c0_17 = arith.constant 0 : index
    %28 = vector.load %arg7[%c0_15, %c0_16, %c0_17] : memref<1x1x512xf32, #tpu.memory_space<vmem>>, vector<1x1x512xf32>
    %29 = vector.shape_cast %28 : vector<1x1x512xf32> to vector<1x512xf32>
    %30 = vector.shape_cast %27 : vector<1x512xf32> to vector<1x1x512xf32>
    tpu.vector_store %arg7[%c0_15, %c0_16, %c0_17], %30 {strides = array<i32>} : memref<1x1x512xf32, #tpu.memory_space<vmem>>, vector<1x1x512xf32>,
    return
  }
  func.func @transform_0(%arg0: i32, %arg1: i32) -> (i32, i32, i32) {
    %c0_i32 = arith.constant 0 : i32
    %c0_i32_0 = arith.constant 0 : i32
    return %arg0, %c0_i32, %arg1 : i32, i32, i32
  }
  func.func @transform_1(%arg0: i32, %arg1: i32) -> (i32, i32) {
    %c0_i32 = arith.constant 0 : i32
    %c0_i32_0 = arith.constant 0 : i32
    %c0_i32_1 = arith.constant 0 : i32
    return %c0_i32, %c0_i32_0 : i32, i32
  }
  func.func @transform_2(%arg0: i32, %arg1: i32) -> (i32, i32) {
    %c0_i32 = arith.constant 0 : i32
    %c0_i32_0 = arith.constant 0 : i32
    %c0_i32_1 = arith.constant 0 : i32
    return %c0_i32, %c0_i32_0 : i32, i32
  }
  func.func @transform_3(%arg0: i32, %arg1: i32) -> (i32, i32) {
    %c0_i32 = arith.constant 0 : i32
    %c0_i32_0 = arith.constant 0 : i32
    %c0_i32_1 = arith.constant 0 : i32
    return %c0_i32, %c0_i32_0 : i32, i32
  }
  func.func @transform_4(%arg0: i32, %arg1: i32) -> (i32, i32) {
    %c0_i32 = arith.constant 0 : i32
    %c0_i32_0 = arith.constant 0 : i32
    %c0_i32_1 = arith.constant 0 : i32
    return %c0_i32, %c0_i32_0 : i32, i32
  }
  func.func @transform_5(%arg0: i32, %arg1: i32) -> (i32, i32, i32) {
    %c0_i32 = arith.constant 0 : i32
    %c0_i32_0 = arith.constant 0 : i32
    return %arg0, %c0_i32, %arg1 : i32, i32, i32
  }
}

</mosaic_0001>

<llo_original>
// kernel: spatial_interaction.1
$region0: #{spatial_interaction.1}
  #allocation0 [shape = 'u32[]', space=smem, size = 0x4, offset = 0x4, fixed_abs, tag = 'smem constant byte address 0x4 - core index']
  #allocation1 [shape = 'u32[144,128]{1,0:T(1,128)}', space=vmem, size = 0x12000, scoped, tag = 'internal scratch']
  #allocation2 [shape = 'f32[1,1]{1,0:T(1,128)S(1)}', space=vmem, size = 0x200, scoped, tag = 'scoped memory for spatial_interaction.1']
  %s0 = inlined_call_operand.vmem [shape: f32[2,32,1024], index: 0, kind: input, shape index: {}]
  %s1 = inlined_call_operand.vmem [shape: f32[8,32], index: 1, kind: input, shape index: {}]
  %s2 = inlined_call_operand.vmem [shape: f32[8,1], index: 2, kind: input, shape index: {}]
  %s3 = inlined_call_operand.vmem [shape: f32[8,1], index: 3, kind: input, shape index: {}]
  %s4 = inlined_call_operand.<no memory space> [shape: f32[1,1], index: 4, kind: input, shape index: {}]
  %s5 = inlined_call_operand.vmem [shape: f32[2,1,1024], index: 5, kind: output, shape index: {}]
  %s6 = sld [smem:[#allocation0]]
  $region76: #{spatial_interaction.1} parent=0
    _
  %s8 = ssub.s32 1, %s6
  %s9 = scalar_select 0, %s8, %s6
  %v10 = vstv %s4
  %11 = vst [vmem:[#allocation2] sm:$0x1] %v10
  $region1: #{spatial_interaction.1} parent=0
    #allocation3 [shape = 'u8[131072]{0}', space=vmem, size = 0x20000, scoped, tag = 'input window, operand 0']
    loop: start=0, step=1, limit=6
    $region2: #{spatial_interaction.1} parent=1 // loop_pre_header
      _
    $region3: #{spatial_interaction.1} parent=1 // loop_header
      %s13 = sphi 0, %s17
      %p14 = scmp.ge.s32.totalorder %s13, 6
      %s20 = sphi 0, %s32
      %s21 = sphi 0, %s28
      %s22 = sphi 0, %s20
      %s23 = sphi 0, %s21
      %s24 = sphi 0, %s22
      %s25 = sphi 0, %s23
      %s37 = sphi 0, %s39
      %s40 = sphi 0, %s37
      %s41 = sphi 0, %s40
      %s57 = sphi 0, %s41
      %s61 = sphi 0, %s61
      %s63 = sphi 0, %s61
      %s64 = sphi 0, %s63
      %s78 = sphi 0, %s64
      %s82 = sphi 0, %s82
      %s84 = sphi 0, %s82
      %s85 = sphi 0, %s84
      %s99 = sphi 0, %s85
      %s103 = sphi 0, %s103
      %s105 = sphi 0, %s103
      %s106 = sphi 0, %s105
      %s120 = sphi 0, %s106
      %s124 = sphi 0, %s124
      %s126 = sphi 0, %s124
      %s127 = sphi 0, %s126
      %s141 = sphi 0, %s127
      %s149 = sphi 0, %s151
      %s152 = sphi 0, %s149
      %s153 = sphi 0, %s152
      %s169 = sphi 0, %s153
    $region4: #{spatial_interaction.1} parent=1 // loop_header_branch
      %16 = sbr.rel (%p14) target = $region8
    $region5: #{spatial_interaction.1} parent=1 // loop_body
      %s18 = ssub.s32 %s13, 1
      %s19 = ssub.s32 %s13, 2
      %s26 = sadd.s32 1, %s21
      %p27 = scmp.ge.s32.totalorder %s26, 2
      %s28 = scalar_select %p27, 0, %s26
      %s29 = sadd.s32 1, %s20
      %s30 = scalar_select %p27, %s29, %s20
      %p31 = scmp.ge.s32.totalorder %s30, 2
      %s32 = scalar_select %p31, 0, %s30
      %s33 = ssub.s32 %s20, %s32
      %s34 = ssub.s32 %s21, %s28
      %s35 = sor.u32 %s33, %s34
      %p36 = scmp.eq.s32.totalorder %s35, 0
      %s38 = sadd.s32 %s37, 1
      %s39 = scalar_select %p36, %s37, %s38
      %p42 = pneg %p36
      %p43 = scmp.eq.s32.totalorder %s13, 3
      %p44 = por %p42, %p43
      %p45 = scmp.ne.s32.totalorder %s37, %s40
      %p46 = scmp.eq.s32.totalorder %s13, 0
      %p47 = por %p45, %p46
      %p48 = scmp.ne.s32.totalorder %s37, %s40
      %p49 = scmp.eq.s32.totalorder %s18, 3
      %p50 = por %p48, %p49
      %p51 = scmp.ne.s32.totalorder %s40, %s41
      %p52 = scmp.eq.s32.totalorder %s18, 0
      %p53 = por %p51, %p52
      %p54 = scmp.ne.s32.totalorder %s40, %s41
      %p55 = scmp.eq.s32.totalorder %s19, 3
      %p56 = por %p54, %p55
      %p58 = scmp.ne.s32.totalorder %s41, %s57
      %p59 = scmp.eq.s32.totalorder %s19, 0
      %p60 = por %p58, %p59
      %s62 = sadd.s32 %s61, 1
      %p65 = scmp.eq.s32.totalorder %s13, 3
      %p66 = scmp.ne.s32.totalorder %s61, %s63
      %p67 = scmp.eq.s32.totalorder %s13, 0
      %p68 = por %p66, %p67
      %p69 = scmp.ne.s32.totalorder %s61, %s63
      %p70 = scmp.eq.s32.totalorder %s18, 3
      %p71 = por %p69, %p70
      %p72 = scmp.ne.s32.totalorder %s63, %s64
      %p73 = scmp.eq.s32.totalorder %s18, 0
      %p74 = por %p72, %p73
      %p75 = scmp.ne.s32.totalorder %s63, %s64
      %p76 = scmp.eq.s32.totalorder %s19, 3
      %p77 = por %p75, %p76
      %p79 = scmp.ne.s32.totalorder %s64, %s78
      %p80 = scmp.eq.s32.totalorder %s19, 0
      %p81 = por %p79, %p80
      %s83 = sadd.s32 %s82, 1
      %p86 = scmp.eq.s32.totalorder %s13, 3
      %p87 = scmp.ne.s32.totalorder %s82, %s84
      %p88 = scmp.eq.s32.totalorder %s13, 0
      %p89 = por %p87, %p88
      %p90 = scmp.ne.s32.totalorder %s82, %s84
      %p91 = scmp.eq.s32.totalorder %s18, 3
      %p92 = por %p90, %p91
      %p93 = scmp.ne.s32.totalorder %s84, %s85
      %p94 = scmp.eq.s32.totalorder %s18, 0
      %p95 = por %p93, %p94
      %p96 = scmp.ne.s32.totalorder %s84, %s85
      %p97 = scmp.eq.s32.totalorder %s19, 3
      %p98 = por %p96, %p97
      %p100 = scmp.ne.s32.totalorder %s85, %s99
      %p101 = scmp.eq.s32.totalorder %s19, 0
      %p102 = por %p100, %p101
      %s104 = sadd.s32 %s103, 1
      %p107 = scmp.eq.s32.totalorder %s13, 3
      %p108 = scmp.ne.s32.totalorder %s103, %s105
      %p109 = scmp.eq.s32.totalorder %s13, 0
      %p110 = por %p108, %p109
      %p111 = scmp.ne.s32.totalorder %s103, %s105
      %p112 = scmp.eq.s32.totalorder %s18, 3
      %p113 = por %p111, %p112
      %p114 = scmp.ne.s32.totalorder %s105, %s106
      %p115 = scmp.eq.s32.totalorder %s18, 0
      %p116 = por %p114, %p115
      %p117 = scmp.ne.s32.totalorder %s105, %s106
      %p118 = scmp.eq.s32.totalorder %s19, 3
      %p119 = por %p117, %p118
      %p121 = scmp.ne.s32.totalorder %s106, %s120
      %p122 = scmp.eq.s32.totalorder %s19, 0
      %p123 = por %p121, %p122
      %s125 = sadd.s32 %s124, 1
      %p128 = scmp.eq.s32.totalorder %s13, 3
      %p129 = scmp.ne.s32.totalorder %s124, %s126
      %p130 = scmp.eq.s32.totalorder %s13, 0
      %p131 = por %p129, %p130
      %p132 = scmp.ne.s32.totalorder %s124, %s126
      %p133 = scmp.eq.s32.totalorder %s18, 3
      %p134 = por %p132, %p133
      %p135 = scmp.ne.s32.totalorder %s126, %s127
      %p136 = scmp.eq.s32.totalorder %s18, 0
      %p137 = por %p135, %p136
      %p138 = scmp.ne.s32.totalorder %s126, %s127
      %p139 = scmp.eq.s32.totalorder %s19, 3
      %p140 = por %p138, %p139
      %p142 = scmp.ne.s32.totalorder %s127, %s141
      %p143 = scmp.eq.s32.totalorder %s19, 0
      %p144 = por %p142, %p143
      %s145 = ssub.s32 %s20, %s32
      %s146 = ssub.s32 %s21, %s28
      %s147 = sor.u32 %s145, %s146
      %p148 = scmp.eq.s32.totalorder %s147, 0
      %s150 = sadd.s32 %s149, 1
      %s151 = scalar_select %p148, %s149, %s150
      %p154 = pneg %p148
      %p155 = scmp.eq.s32.totalorder %s13, 3
      %p156 = por %p154, %p155
      %p157 = scmp.ne.s32.totalorder %s149, %s152
      %p158 = scmp.eq.s32.totalorder %s13, 0
      %p159 = por %p157, %p158
      %p160 = scmp.ne.s32.totalorder %s149, %s152
      %p161 = scmp.eq.s32.totalorder %s18, 3
      %p162 = por %p160, %p161
      %p163 = scmp.ne.s32.totalorder %s152, %s153
      %p164 = scmp.eq.s32.totalorder %s18, 0
      %p165 = por %p163, %p164
      %p166 = scmp.ne.s32.totalorder %s152, %s153
      %p167 = scmp.eq.s32.totalorder %s19, 3
      %p168 = por %p166, %p167
      %p170 = scmp.ne.s32.totalorder %s153, %s169
      %p171 = scmp.eq.s32.totalorder %s19, 0
      %p172 = por %p170, %p171
      %p173 = scmp.le.s32.totalorder 1, %s13
      %p174 = scmp.lt.s32.totalorder %s13, 5
      %p175 = pnand %p173, %p174
      %p176 = pneg %p175
      // Predicated region
      $region9: #{spatial_interaction.1} parent=5 // pred_check
        _
      $region10: #{spatial_interaction.1} parent=5 // pred_check_branch
        %178 = sbr.rel (%p175) target = $region12
      $region11: #{spatial_interaction.1} parent=5 // pred_region
        %s179 = ssub.s32 %s13, 1
        // Predicated region
        $region13: #{spatial_interaction.1} parent=11 // pred_check
          %p180 = pneg %p74
        $region14: #{spatial_interaction.1} parent=11 // pred_check_branch
          %182 = sbr.rel (%p180) target = $region16
        $region15: #{spatial_interaction.1} parent=11 // pred_region
          _
        $region16: #{spatial_interaction.1} parent=11 // pred_fallthru
          _
        // Predicated region
        $region17: #{spatial_interaction.1} parent=11 // pred_check
          %p183 = pneg %p95
        $region18: #{spatial_interaction.1} parent=11 // pred_check_branch
          %185 = sbr.rel (%p183) target = $region20
        $region19: #{spatial_interaction.1} parent=11 // pred_region
          _
        $region20: #{spatial_interaction.1} parent=11 // pred_fallthru
          _
        // Predicated region
        $region21: #{spatial_interaction.1} parent=11 // pred_check
          %p186 = pneg %p116
        $region22: #{spatial_interaction.1} parent=11 // pred_check_branch
          %188 = sbr.rel (%p186) target = $region24
        $region23: #{spatial_interaction.1} parent=11 // pred_region
          _
        $region24: #{spatial_interaction.1} parent=11 // pred_fallthru
          _
        // Predicated region
        $region25: #{spatial_interaction.1} parent=11 // pred_check
          %p189 = pneg %p137
        $region26: #{spatial_interaction.1} parent=11 // pred_check_branch
          %191 = sbr.rel (%p189) target = $region28
        $region27: #{spatial_interaction.1} parent=11 // pred_region
          _
        $region28: #{spatial_interaction.1} parent=11 // pred_fallthru
          _
      $region12: #{spatial_interaction.1} parent=5 // pred_fallthru
        _
      %p192 = scmp.lt.s32.totalorder %s13, 4
      // Predicated region
      $region29: #{spatial_interaction.1} parent=5 // pred_check
        %p193 = pneg %p192
      $region30: #{spatial_interaction.1} parent=5 // pred_check_branch
        %195 = sbr.rel (%p193) target = $region32
      $region31: #{spatial_interaction.1} parent=5 // pred_region
        // Predicated region
        $region33: #{spatial_interaction.1} parent=31 // pred_check
          %p196 = pneg %p47
        $region34: #{spatial_interaction.1} parent=31 // pred_check_branch
          %198 = sbr.rel (%p196) target = $region36
        $region35: #{spatial_interaction.1} parent=31 // pred_region
          %s199 = sand.u32 %s37, 1
          %s200 = sand.u32 %s37, 1
          %s201 = smul.addr %s200, 128
          %s202 = scalar_lea.vmem [#allocation3], %s201
          %s203 = smul.u32 4, %s21
          %s204 = smul.addr %s20, 32
          %s205 = sadd.s32 %s203, %s204
          %s206 = smul.addr %s205, 8
          %s207 = scalar_lea.vmem %s0, %s206
          // Predicated region
          $region37: #{spatial_interaction.1} parent=35 // pred_check
            _
          $region38: #{spatial_interaction.1} parent=35 // pred_check_branch
            %209 = sbr.rel (0) target = $region40
          $region39: #{spatial_interaction.1} parent=35 // pred_region
            // Predicated region
            $region41: #{spatial_interaction.1} parent=39 // pred_check
              _
            $region42: #{spatial_interaction.1} parent=39 // pred_check_branch
              %211 = sbr.rel (0) target = $region44
            $region43: #{spatial_interaction.1} parent=39 // pred_region
              loop: start=0, step=1, limit=1
              $region45: #{spatial_interaction.1} parent=43 // loop_pre_header
                _
              $region46: #{spatial_interaction.1} parent=43 // loop_header
                %s213 = sphi 0, %s217
                %p214 = scmp.ge.s32.totalorder %s213, 1
                %s218 = sphi %s207, %s207
                %s219 = sphi %s202, %s202
              $region47: #{spatial_interaction.1} parent=43 // loop_header_branch
                %216 = sbr.rel (%p214) target = $region51
              $region48: #{spatial_interaction.1} parent=43 // loop_body
                %v220 = vld [vmem:[%s218] sm:$0xff]
                %221 = vst [vmem:[%s219] sm:$0xff] %v220
                %v222 = vld [vmem:[%s218 + $0x8] sm:$0xff]
                %223 = vst [vmem:[%s219 + $0x8] sm:$0xff] %v222
                %v224 = vld [vmem:[%s218 + $0x10] sm:$0xff]
                %225 = vst [vmem:[%s219 + $0x10] sm:$0xff] %v224
                %v226 = vld [vmem:[%s218 + $0x18] sm:$0xff]
                %227 = vst [vmem:[%s219 + $0x18] sm:$0xff] %v226
                %v228 = vld [vmem:[%s218 + $0x40] sm:$0xff]
                %229 = vst [vmem:[%s219 + $0x20] sm:$0xff] %v228
                %v230 = vld [vmem:[%s218 + $0x48] sm:$0xff]
                %231 = vst [vmem:[%s219 + $0x28] sm:$0xff] %v230
                %v232 = vld [vmem:[%s218 + $0x50] sm:$0xff]
                %233 = vst [vmem:[%s219 + $0x30] sm:$0xff] %v232
                %v234 = vld [vmem:[%s218 + $0x58] sm:$0xff]
                %235 = vst [vmem:[%s219 + $0x38] sm:$0xff] %v234
                %v236 = vld [vmem:[%s218 + $0x80] sm:$0xff]
                %237 = vst [vmem:[%s219 + $0x40] sm:$0xff] %v236
                %v238 = vld [vmem:[%s218 + $0x88] sm:$0xff]
                %239 = vst [vmem:[%s219 + $0x48] sm:$0xff] %v238
                %v240 = vld [vmem:[%s218 + $0x90] sm:$0xff]
                %241 = vst [vmem:[%s219 + $0x50] sm:$0xff] %v240
                %v242 = vld [vmem:[%s218 + $0x98] sm:$0xff]
                %243 = vst [vmem:[%s219 + $0x58] sm:$0xff] %v242
                %v244 = vld [vmem:[%s218 + $0xc0] sm:$0xff]
                %245 = vst [vmem:[%s219 + $0x60] sm:$0xff] %v244
                %v246 = vld [vmem:[%s218 + $0xc8] sm:$0xff]
                %247 = vst [vmem:[%s219 + $0x68] sm:$0xff] %v246
                %v248 = vld [vmem:[%s218 + $0xd0] sm:$0xff]
                %249 = vst [vmem:[%s219 + $0x70] sm:$0xff] %v248
                %v250 = vld [vmem:[%s218 + $0xd8] sm:$0xff]
                %251 = vst [vmem:[%s219 + $0x78] sm:$0xff] %v250
              $region49: #{spatial_interaction.1} parent=43 // loop_footer
                %s217 = sadd.s32 1, %s213
              $region50: #{spatial_interaction.1} parent=43 // loop_footer_branch
                %212 = sbr.rel target = $region46
              $region51: #{spatial_interaction.1} parent=43 // loop_exit
                _
            $region44: #{spatial_interaction.1} parent=39 // pred_fallthru
              _
            // Predicated region
            $region52: #{spatial_interaction.1} parent=39 // pred_check
              _
            $region53: #{spatial_interaction.1} parent=39 // pred_check_branch
              %253 = sbr.rel target = $region55
            $region54: #{spatial_interaction.1} parent=39 // pred_region
              _
            $region55: #{spatial_interaction.1} parent=39 // pred_fallthru
              _
          $region40: #{spatial_interaction.1} parent=35 // pred_fallthru
            _
          %254 = vnop
        $region36: #{spatial_interaction.1} parent=31 // pred_fallthru
          _
      $region32: #{spatial_interaction.1} parent=5 // pred_fallthru
        _
      %p255 = scmp.le.s32.totalorder 1, %s13
      %p256 = scmp.lt.s32.totalorder %s13, 5
      %p257 = pnand %p255, %p256
      %p258 = pneg %p257
      // Predicated region
      $region56: #{spatial_interaction.1} parent=5 // pred_check
        _
      $region57: #{spatial_interaction.1} parent=5 // pred_check_branch
        %260 = sbr.rel (%p257) target = $region59
      $region58: #{spatial_interaction.1} parent=5 // pred_region
        %s261 = ssub.s32 %s13, 1
        %s262 = sand.u32 %s40, 1
        %s263 = sand.u32 %s40, 1
        %s264 = smul.addr %s263, 128
        %s265 = scalar_lea.vmem [#allocation3], %s264
        // Predicated region
        $region60: #{spatial_interaction.1} parent=58 // pred_check
          %p266 = pneg %p53
        $region61: #{spatial_interaction.1} parent=58 // pred_check_branch
          %268 = sbr.rel (%p266) target = $region63
        $region62: #{spatial_interaction.1} parent=58 // pred_region
          _
        $region63: #{spatial_interaction.1} parent=58 // pred_fallthru
          _
        %s269 = sand.u32 %s40, 1
        %s270 = sand.u32 %s40, 1
        %s271 = smul.addr %s270, 128
        %s272 = scalar_lea.vmem [#allocation3], %s271
        %p273 = pneg %p53
        %p274 = pneg %p50
        %p275 = pneg %p74
        %p276 = pneg %p71
        %p277 = pneg %p95
        %p278 = pneg %p92
        %p279 = pneg %p116
        %p280 = pneg %p113
        %p281 = pneg %p137
        %p282 = pneg %p134
        %p283 = pneg %p165
        %p284 = pneg %p162
        %s285 = smul.u32 4, %s23
        %p286 = scmp.lt.s32.totalorder %s22, 1
        %s287 = scalar_select %p286, %s22, 1
        %p288 = scmp.lt.s32.totalorder %s285, 7
        %s289 = scalar_select %p288, %s285, 7
        %s290 = smul.addr %s287, 8
        %s291 = sadd.s32 %s289, %s290
        %s292 = scalar_lea.vmem %s5, %s291
        %s293 = smul.u32 4, %s23
        %s294 = smul.u32 4, %s23
        %p295 = scmp.lt.s32.totalorder %s22, 1
        %s296 = scalar_select %p295, %s22, 1
        %p297 = scmp.lt.s32.totalorder %s294, 7
        %s298 = scalar_select %p297, %s294, 7
        %s299 = smul.addr %s296, 8
        %s300 = sadd.s32 %s298, %s299
        %s301 = scalar_lea.vmem %s5, %s300
        %s302 = smul.u32 4, %s23
        %v303 = vld [vmem:[%s265] sm:$0xff]
        %v304 = vld [vmem:[%s265 + $0x8] sm:$0xff]
        %v305 = vld [vmem:[%s265 + $0x10] sm:$0xff]
        %v306 = vld [vmem:[%s265 + $0x18] sm:$0xff]
        %v307 = vld [vmem:[%s265 + $0x20] sm:$0xff]
        %v308 = vld [vmem:[%s265 + $0x28] sm:$0xff]
        %v309 = vld [vmem:[%s265 + $0x30] sm:$0xff]
        %v310 = vld [vmem:[%s265 + $0x38] sm:$0xff]
        %v311 = vld [vmem:[%s265 + $0x40] sm:$0xff]
        %v312 = vld [vmem:[%s265 + $0x48] sm:$0xff]
        %v313 = vld [vmem:[%s265 + $0x50] sm:$0xff]
        %v314 = vld [vmem:[%s265 + $0x58] sm:$0xff]
        %v315 = vld [vmem:[%s265 + $0x60] sm:$0xff]
        %v316 = vld [vmem:[%s265 + $0x68] sm:$0xff]
        %v317 = vld [vmem:[%s265 + $0x70] sm:$0xff]
        %v318 = vld [vmem:[%s265 + $0x78] sm:$0xff]
        %v319 = vld [vmem:[%s1] sm:$0xff]
        %v320 = vld [vmem:[%s2] sm:$0xff]
        %322 = vset.pattern.permute.xlu0 0
        %323 = vperm.xlu0 %322, %v320
        %v324 = vpop.permute.xlu0 %323
        %vm326 = vcmask 261120
        %v328 = vsel %vm326, %v319, 0
        %330 = vmatprep.subr.mxu0 %v304
        %331 = vmatpush1.msra.mxu0 %v303
        %332 = vmatprep.subr.mxu0 %v308
        %333 = vmatpush1.msra.mxu0 %v307
        %334 = vmatprep.subr.mxu0 %v312
        %335 = vmatpush1.msra.mxu0 %v311
        %336 = vmatprep.subr.mxu0 %v316
        %337 = vmatpush1.msra.mxu0 %v315
        %338 = vmatprep.subr.mxu0 0.0
        %339 = vmatpush1.msra.mxu0 0.0
        %340 = vmatprep.subr.mxu0 0.0
        %341 = vmatpush1.msra.mxu0 0.0
        %342 = vmatprep.subr.mxu0 0.0
        %343 = vmatpush1.msra.mxu0 0.0
        %344 = vmatprep.subr.mxu0 0.0
        %345 = vmatpush1.msra.mxu0 0.0
        %346 = vmatprep.subr.mxu0 0.0
        %347 = vmatpush1.msra.mxu0 0.0
        %348 = vmatprep.subr.mxu0 0.0
        %349 = vmatpush1.msra.mxu0 0.0
        %350 = vmatprep.subr.mxu0 0.0
        %351 = vmatpush1.msra.mxu0 0.0
        %352 = vmatprep.subr.mxu0 0.0
        %353 = vmatpush1.msra.mxu0 0.0
        %354 = vmatprep.subr.mxu0 0.0
        %355 = vmatpush1.msra.mxu0 0.0
        %356 = vmatprep.subr.mxu0 0.0
        %357 = vmatpush1.msra.mxu0 0.0
        %358 = vmatprep.subr.mxu0 0.0
        %359 = vmatpush1.msra.mxu0 0.0
        %360 = vmatprep.subr.mxu0 0.0
        %361 = vmatpush1.msra.mxu0 0.0
        %362 = vmatprep.subr.mxu0 0.0
        %363 = vmatpush1.msra.mxu0 0.0
        %364 = vmatprep.subr.mxu0 0.0
        %365 = vmatpush1.msra.mxu0 0.0
        %366 = vmatprep.subr.mxu0 0.0
        %367 = vmatpush1.msra.mxu0 0.0
        %368 = vmatprep.subr.mxu0 0.0
        %369 = vmatpush1.msra.mxu0 0.0
        %370 = vmatprep.subr.mxu0 0.0
        %371 = vmatpush1.msra.mxu0 0.0
        %372 = vmatprep.subr.mxu0 0.0
        %373 = vmatpush1.msra.mxu0 0.0
        %374 = vmatprep.subr.mxu0 0.0
        %375 = vmatpush1.msra.mxu0 0.0
        %376 = vmatprep.subr.mxu0 0.0
        %377 = vmatpush1.msra.mxu0 0.0
        %378 = vmatprep.subr.mxu0 0.0
        %379 = vmatpush1.msra.mxu0 0.0
        %380 = vmatprep.subr.mxu0 0.0
        %381 = vmatpush1.msra.mxu0 0.0
        %382 = vmatprep.subr.mxu0 0.0
        %383 = vmatpush1.msra.mxu0 0.0
        %384 = vmatprep.subr.mxu0 0.0
        %385 = vmatpush1.msra.mxu0 0.0
        %386 = vmatprep.subr.mxu0 0.0
        %387 = vmatpush1.msra.mxu0 0.0
        %388 = vmatprep.subr.mxu0 0.0
        %389 = vmatpush1.msra.mxu0 0.0
        %390 = vmatprep.subr.mxu0 0.0
        %391 = vmatpush1.msra.mxu0 0.0
        %392 = vmatprep.subr.mxu0 0.0
        %393 = vmatpush1.msra.mxu0 0.0
        %394 = vmatprep.mubr.f32.mxu0 0.0
        %395 = vmatmul.mubr.f32.gmra.mrb[0].mxu0 %v328
        %v396 = vpop.f32.mrb[0].mxu0
        %v397 = vadd.f32 %v324, %v396
        %v398 = vpop.f32.mrb[0].mxu0
        %v399 = vadd.f32 %v324, %v398
        %400 = vdwg.mxu0
        %401 = vmatprep.subr.mxu0 %v306
        %402 = vmatpush1.msra.mxu0 %v305
        %403 = vmatprep.subr.mxu0 %v310
        %404 = vmatpush1.msra.mxu0 %v309
        %405 = vmatprep.subr.mxu0 %v314
        %406 = vmatpush1.msra.mxu0 %v313
        %407 = vmatprep.subr.mxu0 %v318
        %408 = vmatpush1.msra.mxu0 %v317
        %409 = vmatprep.subr.mxu0 0.0
        %410 = vmatpush1.msra.mxu0 0.0
        %411 = vmatprep.subr.mxu0 0.0
        %412 = vmatpush1.msra.mxu0 0.0
        %413 = vmatprep.subr.mxu0 0.0
        %414 = vmatpush1.msra.mxu0 0.0
        %415 = vmatprep.subr.mxu0 0.0
        %416 = vmatpush1.msra.mxu0 0.0
        %417 = vmatprep.subr.mxu0 0.0
        %418 = vmatpush1.msra.mxu0 0.0
        %419 = vmatprep.subr.mxu0 0.0
        %420 = vmatpush1.msra.mxu0 0.0
        %421 = vmatprep.subr.mxu0 0.0
        %422 = vmatpush1.msra.mxu0 0.0
        %423 = vmatprep.subr.mxu0 0.0
        %424 = vmatpush1.msra.mxu0 0.0
        %425 = vmatprep.subr.mxu0 0.0
        %426 = vmatpush1.msra.mxu0 0.0
        %427 = vmatprep.subr.mxu0 0.0
        %428 = vmatpush1.msra.mxu0 0.0
        %429 = vmatprep.subr.mxu0 0.0
        %430 = vmatpush1.msra.mxu0 0.0
        %431 = vmatprep.subr.mxu0 0.0
        %432 = vmatpush1.msra.mxu0 0.0
        %433 = vmatprep.subr.mxu0 0.0
        %434 = vmatpush1.msra.mxu0 0.0
        %435 = vmatprep.subr.mxu0 0.0
        %436 = vmatpush1.msra.mxu0 0.0
        %437 = vmatprep.subr.mxu0 0.0
        %438 = vmatpush1.msra.mxu0 0.0
        %439 = vmatprep.subr.mxu0 0.0
        %440 = vmatpush1.msra.mxu0 0.0
        %441 = vmatprep.subr.mxu0 0.0
        %442 = vmatpush1.msra.mxu0 0.0
        %443 = vmatprep.subr.mxu0 0.0
        %444 = vmatpush1.msra.mxu0 0.0
        %445 = vmatprep.subr.mxu0 0.0
        %446 = vmatpush1.msra.mxu0 0.0
        %447 = vmatprep.subr.mxu0 0.0
        %448 = vmatpush1.msra.mxu0 0.0
        %449 = vmatprep.subr.mxu0 0.0
        %450 = vmatpush1.msra.mxu0 0.0
        %451 = vmatprep.subr.mxu0 0.0
        %452 = vmatpush1.msra.mxu0 0.0
        %453 = vmatprep.subr.mxu0 0.0
        %454 = vmatpush1.msra.mxu0 0.0
        %455 = vmatprep.subr.mxu0 0.0
        %456 = vmatpush1.msra.mxu0 0.0
        %457 = vmatprep.subr.mxu0 0.0
        %458 = vmatpush1.msra.mxu0 0.0
        %459 = vmatprep.subr.mxu0 0.0
        %460 = vmatpush1.msra.mxu0 0.0
        %461 = vmatprep.subr.mxu0 0.0
        %462 = vmatpush1.msra.mxu0 0.0
        %463 = vmatprep.subr.mxu0 0.0
        %464 = vmatpush1.msra.mxu0 0.0
        %465 = vmatprep.mubr.f32.mxu0 0.0
        %466 = vmatmul.mubr.f32.gmra.mrb[0].mxu0 %v328
        %v467 = vpop.f32.mrb[0].mxu0
        %v468 = vadd.f32 %v324, %v467
        %v469 = vpop.f32.mrb[0].mxu0
        %v470 = vadd.f32 %v324, %v469
        %471 = vdwg.mxu0
        %v472 = vmul.f32 %v397, 0.5
        %v473 = vmul.f32 %v399, 0.5
        %v474 = vmul.f32 %v468, 0.5
        %v475 = vmul.f32 %v470, 0.5
        %v476 = vmul.f32 %v397, 0.70710677
        %v477 = vmul.f32 %v399, 0.70710677
        %v478 = vmul.f32 %v468, 0.70710677
        %v479 = vmul.f32 %v470, 0.70710677
        %v480 = verf.f32.pop %v476
        %v481 = verf.f32.pop %v477
        %v482 = verf.f32.pop %v478
        %v483 = verf.f32.pop %v479
        %v484 = vadd.f32 %v480, 1.0
        %v485 = vadd.f32 %v481, 1.0
        %v486 = vadd.f32 %v482, 1.0
        %v487 = vadd.f32 %v483, 1.0
        %v488 = vmul.f32 %v472, %v484
        %v489 = vmul.f32 %v473, %v485
        %v490 = vmul.f32 %v474, %v486
        %v491 = vmul.f32 %v475, %v487
        %v492 = vld [vmem:[%s3] sm:$0xff]
        %494 = vset.pattern.permute.xlu0 0
        %495 = vperm.xlu0 %494, %v492
        %v496 = vpop.permute.xlu0 %495
        %v498 = vmul.f32 %v488, %v496
        %v499 = vmul.f32 %v489, %v496
        %v500 = vmul.f32 %v490, %v496
        %v501 = vmul.f32 %v491, %v496
        %v502 = vrot.slane %v498, 4
        %v503 = vadd.f32 %v498, %v502
        %v504 = vrot.slane %v503, 2
        %v505 = vadd.f32 %v503, %v504
        %v506 = vrot.slane %v505, 1
        %v507 = vadd.f32 %v505, %v506
        %v508 = vrot.slane %v499, 4
        %v509 = vadd.f32 %v499, %v508
        %v510 = vrot.slane %v509, 2
        %v511 = vadd.f32 %v509, %v510
        %v512 = vrot.slane %v511, 1
        %v513 = vadd.f32 %v511, %v512
        %v514 = vrot.slane %v500, 4
        %v515 = vadd.f32 %v500, %v514
        %v516 = vrot.slane %v515, 2
        %v517 = vadd.f32 %v515, %v516
        %v518 = vrot.slane %v517, 1
        %v519 = vadd.f32 %v517, %v518
        %v520 = vrot.slane %v501, 4
        %v521 = vadd.f32 %v501, %v520
        %v522 = vrot.slane %v521, 2
        %v523 = vadd.f32 %v521, %v522
        %v524 = vrot.slane %v523, 1
        %v525 = vadd.f32 %v523, %v524
        %v526 = vld [vmem:[#allocation2] sm:$0x1]
        %528 = vset.pattern.permute.xlu0 0
        %529 = vperm.xlu0 %528, %v526
        %v530 = vpop.permute.xlu0 %529
        %v532 = vlaneseq
        %v533 = vshrl.u32 %v532, 7
        %v534 = vsub.s32 0, %v533
        %v535 = vrot.slane %v530, %v534
        %v536 = vadd.f32 %v507, %v535
        %v537 = vadd.f32 %v513, %v535
        %v538 = vadd.f32 %v519, %v535
        %v539 = vadd.f32 %v525, %v535
        %v540 = vxor.u32 %v536, 2147483648
        %v541 = vxor.u32 %v537, 2147483648
        %v542 = vxor.u32 %v538, 2147483648
        %v543 = vxor.u32 %v539, 2147483648
        %v544 = vmul.f32 %v540, 1.442695
        %v545 = vpow.pop %v544
        %v546 = vmul.f32 %v541, 1.442695
        %v547 = vpow.pop %v546
        %v548 = vmul.f32 %v542, 1.442695
        %v549 = vpow.pop %v548
        %v550 = vmul.f32 %v543, 1.442695
        %v551 = vpow.pop %v550
        %v552 = vadd.f32 %v545, 1.0
        %v553 = vadd.f32 %v547, 1.0
        %v554 = vadd.f32 %v549, 1.0
        %v555 = vadd.f32 %v551, 1.0
        %v556 = vrcp.pop %v552
        %v557 = vmul.f32 1.0, %v556
        %v558 = vrcp.pop %v553
        %v559 = vmul.f32 1.0, %v558
        %v560 = vrcp.pop %v554
        %v561 = vmul.f32 1.0, %v560
        %v562 = vrcp.pop %v555
        %v563 = vmul.f32 1.0, %v562
        %v568 = vcombine.low %v557, %v559
        %v569 = vcombine.low %v561, %v563
        %v571 = vunpack.c.l.s4 1966171168
        %v572 = vunpack.c.0.s8 %v571
        %v573 = vlaneseq
        %v574 = vshrl.u32 %v573, 7
        %v575 = vsub.s32 %v572, %v574
        %v576 = vrot.slane %v568, %v575
        %v578 = vunpack.c.l.s4 1966171168
        %v579 = vunpack.c.0.s8 %v578
        %v580 = vlaneseq
        %v581 = vshrl.u32 %v580, 7
        %v582 = vsub.s32 %v579, %v581
        %v583 = vrot.slane %v569, %v582
        %v584 = vcombine.low %v576, %v583
        %v586 = vunpack.c.l.s4 1966171168
        %v587 = vunpack.c.0.s8 %v586
        %v588 = vlaneseq
        %v589 = vshrl.u32 %v588, 7
        %v590 = vsub.s32 %v587, %v589
        %v591 = vrot.slane %v584, %v590
        %v593 = vlaneseq
        %vm594 = vcmp.ge.s32.totalorder %v593, 0
        %vm595 = vcmp.lt.s32.totalorder %v593, 512
        %vm596 = vmand %vm594, %vm595
        %597 = vst.msk [vmem:[%s301] sm:$0xf] %vm596, %v591
        %s598 = smul.u32 4, %s23
        %p599 = scmp.lt.s32.totalorder %s22, 1
        %s600 = scalar_select %p599, %s22, 1
        %p601 = scmp.lt.s32.totalorder %s598, 7
        %s602 = scalar_select %p601, %s598, 7
        %s603 = smul.addr %s600, 8
        %s604 = sadd.s32 %s602, %s603
        %s605 = scalar_lea.vmem %s5, %s604
        // Predicated region
        $region64: #{spatial_interaction.1} parent=58 // pred_check
          %p606 = pneg %p162
        $region65: #{spatial_interaction.1} parent=58 // pred_check_branch
          %608 = sbr.rel (%p606) target = $region67
        $region66: #{spatial_interaction.1} parent=58 // pred_region
          %s609 = smul.u32 4, %s23
        $region67: #{spatial_interaction.1} parent=58 // pred_fallthru
          _
      $region59: #{spatial_interaction.1} parent=5 // pred_fallthru
        _
      %p610 = scmp.le.s32.totalorder 2, %s13
      // Predicated region
      $region68: #{spatial_interaction.1} parent=5 // pred_check
        %p611 = pneg %p610
      $region69: #{spatial_interaction.1} parent=5 // pred_check_branch
        %613 = sbr.rel (%p611) target = $region71
      $region70: #{spatial_interaction.1} parent=5 // pred_region
        %s614 = ssub.s32 %s13, 2
        // Predicated region
        $region72: #{spatial_interaction.1} parent=70 // pred_check
          %p615 = pneg %p168
        $region73: #{spatial_interaction.1} parent=70 // pred_check_branch
          %617 = sbr.rel (%p615) target = $region75
        $region74: #{spatial_interaction.1} parent=70 // pred_region
          %s618 = smul.u32 4, %s25
          %p619 = scmp.lt.s32.totalorder %s24, 1
          %s620 = scalar_select %p619, %s24, 1
          %p621 = scmp.lt.s32.totalorder %s618, 7
          %s622 = scalar_select %p621, %s618, 7
          %s623 = smul.addr %s620, 8
          %s624 = sadd.s32 %s622, %s623
          %s625 = scalar_lea.vmem %s5, %s624
        $region75: #{spatial_interaction.1} parent=70 // pred_fallthru
          _
      $region71: #{spatial_interaction.1} parent=5 // pred_fallthru
        _
    $region6: #{spatial_interaction.1} parent=1 // loop_footer
      %s17 = sadd.s32 1, %s13
    $region7: #{spatial_interaction.1} parent=1 // loop_footer_branch
      %12 = sbr.rel target = $region3
    $region8: #{spatial_interaction.1} parent=1 // loop_exit
      _

</llo_original>
